<compile_context>
chip_gen: v6e
topology: v6e:2x2x1
jax: 0.10.0
libtpu: 0.0.40
codegen_flags: <defaults>
</compile_context>

<pallas_src>
import math

import jax
import jax.numpy as jnp
from jax.experimental import pallas as pl
from jax.experimental.pallas import tpu as pltpu  # noqa: F401  (kept for the TODOs above)


P = 128            # lane width: every feature dim is padded to this
ROWS_PER_LAYER = P + 8   # P weight rows + an 8-row (sublane-aligned) bias strip


# ---------------- Fused Pallas kernel ----------------------------------------

def _make_fused_mlp_kernel(n_layers, p=P):
    """Fused kernel: Linear(+ReLU) x (n_layers-1) -> Linear -> Softmax(dim=1).

    Signature: kernel(x_ref, slab_ref, out_ref).
    `slab_ref` holds all layers: layer l occupies rows
      [l*(p+8), l*(p+8)+p)   -> transposed weight (p, p)
      row l*(p+8)+p          -> bias (1, p)
    All slice starts are multiples of 8 (sublane aligned); all intermediates
    stay in vregs/VMEM."""

    def kernel(x_ref, slab_ref, out_ref):
        h = x_ref[...]                                      # (B, P) f32
        for l in range(n_layers):
            base = l * (p + 8)
            w = slab_ref[base:base + p, :]                  # (P, P) pre-transposed
            b = slab_ref[base + p:base + p + 1, :]          # (1, P) -> broadcasts
            y = jnp.dot(h, w, preferred_element_type=jnp.float32) + b
            if l < n_layers - 1:
                h = jnp.maximum(y, 0.0)                     # ReLU
            else:
                # Softmax over dim=1. Padded lanes have bias -1e30 -> exp -> 0,
                # so the distribution over the real classes is exact.
                m = jnp.max(y, axis=1, keepdims=True)
                e = jnp.exp(y - m)
                s = jnp.sum(e, axis=1, keepdims=True)
                out_ref[...] = e / s                        # exact normalize

    return kernel


# ---------------- Wrapper ------------------------------------------------------

def classifier_forward(slab, x, layer_sizes):
    """Whole forward pass as ONE fused, gridless pallas_call.

    slab : (n_layers*(P+8), P) f32 packed parameter slab (see pack_params).
    x    : (B, layer_sizes[0]) f32 input.
    Returns (B, layer_sizes[-1]) softmax probabilities."""
    n_layers = len(layer_sizes) - 1
    B, d_in = x.shape
    d_final = layer_sizes[-1]

    # Lane-pad the input once in the wrapper (zero columns hit zero weight rows).
    x_pad = jnp.zeros((B, P), dtype=jnp.float32).at[:, :d_in].set(x)

    flops = sum(2 * B * P * P for _ in range(n_layers))
    bytes_accessed = (x_pad.size + slab.size + B * P) * 4

    out_pad = pl.pallas_call(
        _make_fused_mlp_kernel(n_layers),
        out_shape=jax.ShapeDtypeStruct((B, P), jnp.float32),
        in_specs=[
            pl.BlockSpec(x_pad.shape, lambda: (0, 0)),   # one DMA: activations
            pl.BlockSpec(slab.shape, lambda: (0, 0)),    # one DMA: ALL params
        ],
        out_specs=pl.BlockSpec((B, P), lambda: (0, 0)),  # lane-dense store
        cost_estimate=pl.CostEstimate(
            flops=flops,
            transcendentals=B * P,          # exp in the softmax epilogue
            bytes_accessed=bytes_accessed),
    )(x_pad, slab)

    return out_pad[:, :d_final]


# ---------------- Parameter init + packing (mirrors the PyTorch module) ------

def init_classifier_params(key, layer_sizes):
    """weight: xavier normal (gain=1), shape (out, in) -> stored transposed (in, out)
       bias:   default nn.Linear init U(-1/sqrt(in), 1/sqrt(in))"""
    params = []
    for idx in range(len(layer_sizes) - 1):
        fan_in, fan_out = layer_sizes[idx], layer_sizes[idx + 1]
        key, kw, kb = jax.random.split(key, 3)
        std = math.sqrt(2.0 / (fan_in + fan_out))
        w = jax.random.normal(kw, (fan_out, fan_in), dtype=jnp.float32) * std
        bound = 1.0 / math.sqrt(fan_in)
        b = jax.random.uniform(kb, (fan_out,), dtype=jnp.float32,
                               minval=-bound, maxval=bound)
        params.append((jnp.transpose(w), b))
    return params


def pack_params(params):
    """Pack all (W_t, b) into one lane-padded slab of shape (n*(P+8), P).

    Hidden layers: zero-padded weights/biases (harmless through ReLU).
    Final layer:   padded bias lanes = -1e30 so padded logits vanish in softmax."""
    n = len(params)
    slab = jnp.zeros((n * ROWS_PER_LAYER, P), dtype=jnp.float32)
    for l, (w_t, b) in enumerate(params):
        d_in, d_out = w_t.shape
        base = l * ROWS_PER_LAYER
        slab = slab.at[base:base + d_in, :d_out].set(w_t)
        if l == n - 1:
            bias_row = jnp.full((P,), -1e30, dtype=jnp.float32)
        else:
            bias_row = jnp.zeros((P,), dtype=jnp.float32)
        bias_row = bias_row.at[:d_out].set(b)
        slab = slab.at[base + P, :].set(bias_row)
    return slab


# ---------------- Reference (plain JAX) for sanity check ---------------------

def classifier_forward_ref(params, x):
    n = len(params)
    for i, (w_t, b) in enumerate(params):
        y = x @ w_t + b[None, :]
        if i < n - 1:
            x = jnp.maximum(y, 0.0)
        else:
            x = jax.nn.softmax(y, axis=1)
    return x


if __name__ == "__main__":
    layer_sizes = [32, 64, 16]   # small MLP: 32 -> 64 (ReLU) -> 16 (Softmax)
    batch = 8

    key = jax.random.PRNGKey(0)
    key, kx = jax.random.split(key)
    x = jax.random.normal(kx, (batch, layer_sizes[0]), dtype=jnp.float32)

    params = init_classifier_params(key, layer_sizes)
    slab = pack_params(params)

    out = classifier_forward(slab, x, layer_sizes)
    out = jax.block_until_ready(out)

    ref = classifier_forward_ref(params, x)
    assert out.shape == (batch, layer_sizes[-1])
    assert jnp.allclose(jnp.sum(out, axis=1), 1.0, atol=1e-5)
    assert jnp.allclose(out, ref, atol=1e-5, rtol=1e-5)

    print("KERNEL_OK")
</pallas_src>

<mosaic_0001>
module attributes {stable_mosaic.version = 11 : i64} {
  func.func @kernel(%arg0: memref<8x128xf32, #tpu.memory_space<vmem>>, %arg1: memref<272x128xf32, #tpu.memory_space<vmem>>, %arg2: memref<8x128xf32, #tpu.memory_space<vmem>>) attributes {dimension_semantics = [], scalar_prefetch = 0 : i64, scratch_operands = 0 : i64, tpu.core_type = #tpu.core_type<tc>} {
    %c0 = arith.constant 0 : index
    %c0_0 = arith.constant 0 : index
    %0 = vector.load %arg0[%c0, %c0_0] : memref<8x128xf32, #tpu.memory_space<vmem>>, vector<8x128xf32>
    %c0_1 = arith.constant 0 : index
    %c0_2 = arith.constant 0 : index
    %1 = vector.load %arg1[%c0_1, %c0_2] : memref<272x128xf32, #tpu.memory_space<vmem>>, vector<128x128xf32>
    %c128 = arith.constant 128 : index
    %c0_3 = arith.constant 0 : index
    %2 = vector.load %arg1[%c128, %c0_3] : memref<272x128xf32, #tpu.memory_space<vmem>>, vector<1x128xf32>
    %cst = arith.constant dense<0.000000e+00> : vector<8x128xf32>
    %3 = tpu.matmul %0, %1, %cst {dimension_numbers = #tpu.dot_dimension_numbers<[1], [0], [0], [1], [0, 0, 1, 1], [], []>} : vector<8x128xf32>, vector<128x128xf32>, vector<8x128xf32> -> vector<8x128xf32>
    %4 = vector.broadcast %2 : vector<1x128xf32> to vector<8x128xf32>
    %5 = arith.addf %3, %4 : vector<8x128xf32>
    %cst_4 = arith.constant 0.000000e+00 : f32
    %6 = vector.broadcast %cst_4 : f32 to vector<8x128xf32>
    %7 = arith.maximumf %5, %6 : vector<8x128xf32>
    %c136 = arith.constant 136 : index
    %c0_5 = arith.constant 0 : index
    %8 = vector.load %arg1[%c136, %c0_5] : memref<272x128xf32, #tpu.memory_space<vmem>>, vector<128x128xf32>
    %c264 = arith.constant 264 : index
    %c0_6 = arith.constant 0 : index
    %9 = vector.load %arg1[%c264, %c0_6] : memref<272x128xf32, #tpu.memory_space<vmem>>, vector<1x128xf32>
    %cst_7 = arith.constant dense<0.000000e+00> : vector<8x128xf32>
    %10 = tpu.matmul %7, %8, %cst_7 {dimension_numbers = #tpu.dot_dimension_numbers<[1], [0], [0], [1], [0, 0, 1, 1], [], []>} : vector<8x128xf32>, vector<128x128xf32>, vector<8x128xf32> -> vector<8x128xf32>
    %11 = vector.broadcast %9 : vector<1x128xf32> to vector<8x128xf32>
    %12 = arith.addf %10, %11 : vector<8x128xf32>
    %cst_8 = arith.constant dense<0xFF800000> : vector<8xf32>
    %13 = vector.multi_reduction <maximumf>, %12, %cst_8 [1] : vector<8x128xf32> to vector<8xf32>
    %14 = vector.shape_cast %13 : vector<8xf32> to vector<8x1xf32>
    %15 = vector.broadcast %14 : vector<8x1xf32> to vector<8x128xf32>
    %16 = arith.subf %12, %15 : vector<8x128xf32>
    %17 = math.exp %16 : vector<8x128xf32>
    %cst_9 = arith.constant dense<0.000000e+00> : vector<8xf32>
    %18 = vector.multi_reduction <add>, %17, %cst_9 [1] : vector<8x128xf32> to vector<8xf32>
    %19 = vector.shape_cast %18 : vector<8xf32> to vector<8x1xf32>
    %20 = vector.broadcast %19 : vector<8x1xf32> to vector<8x128xf32>
    %21 = arith.divf %17, %20 : vector<8x128xf32>
    %c0_10 = arith.constant 0 : index
    %c0_11 = arith.constant 0 : index
    %22 = vector.load %arg2[%c0_10, %c0_11] : memref<8x128xf32, #tpu.memory_space<vmem>>, vector<8x128xf32>
    tpu.vector_store %arg2[%c0_10, %c0_11], %21 {strides = array<i32>} : memref<8x128xf32, #tpu.memory_space<vmem>>, vector<8x128xf32>,
    return
  }
}

</mosaic_0001>

<llo_original>
// kernel: tpu_custom_call.1
$region0: #{tpu_custom_call.1}
  #allocation0 [shape = 'u32[]', space=smem, size = 0x4, offset = 0x4, fixed_abs, tag = 'smem constant byte address 0x4 - core index']
  #allocation1 [shape = 'u32[144,128]{1,0:T(1,128)}', space=vmem, size = 0x12000, scoped, tag = 'internal scratch']
  %s0 = inlined_call_operand.hbm [shape: f32[8,128], index: 0, kind: input, shape index: {}]
  %s1 = inlined_call_operand.hbm [shape: f32[272,128], index: 1, kind: input, shape index: {}]
  %s2 = inlined_call_operand.hbm [shape: f32[8,128], index: 2, kind: output, shape index: {}]
  %s3 = sld [smem:[#allocation0]]
  $region26: #{tpu_custom_call.1} parent=0
    _
  %s5 = ssub.s32 1, %s3
  %s6 = scalar_select 0, %s5, %s3
  $region1: #{tpu_custom_call.1} parent=0
    #allocation2 [shape = 'u8[4096]{0}', space=vmem, size = 0x1000, scoped, tag = 'input window, operand 0, single buffered']
    #allocation3 [shape = 's32[1]{0}', space=sflag, size = 0x4, scoped, tag = 'scoped memory for tpu_custom_call.1']
    #allocation4 [shape = 's32[1]{0}', space=sflag, size = 0x4, scoped, tag = 'scoped memory for tpu_custom_call.1']
    #allocation5 [shape = 'u8[139264]{0}', space=vmem, size = 0x22000, scoped, tag = 'input window, operand 1, single buffered']
    #allocation6 [shape = 's32[1]{0}', space=sflag, size = 0x4, scoped, tag = 'scoped memory for tpu_custom_call.1']
    #allocation7 [shape = 'u8[4096]{0}', space=vmem, size = 0x1000, scoped, tag = 'output window, operand 0, single buffered']
    %7 = vsyncpa [#allocation3], 0
    %8 = vsyncpa [#allocation6], 0
    %9 = vsyncpa [#allocation4], 0
    // Predicated region
    $region2: #{tpu_custom_call.1} parent=1 // pred_check
      _
    $region3: #{tpu_custom_call.1} parent=1 // pred_check_branch
      %11 = sbr.rel (0) target = $region5
    $region4: #{tpu_custom_call.1} parent=1 // pred_region
      %s13 = ssub.s32 128, 128
      %14 = vsyncadd [#allocation3], %s13
      %s16 = sshll.u32 [#allocation2], 4
      %s17 = int_to_ptr.vmem [resolvable:$true] %s16
      %19 = dma.hbm_to_vmem [thread:$0]  %s0, 128, %s17, [#allocation3]
    $region5: #{tpu_custom_call.1} parent=1 // pred_fallthru
      _
    // Predicated region
    $region6: #{tpu_custom_call.1} parent=1 // pred_check
      _
    $region7: #{tpu_custom_call.1} parent=1 // pred_check_branch
      %21 = sbr.rel (0) target = $region9
    $region8: #{tpu_custom_call.1} parent=1 // pred_region
      %s23 = ssub.s32 4352, 4352
      %24 = vsyncadd [#allocation6], %s23
      %s25 = sshll.u32 [#allocation5], 4
      %s26 = int_to_ptr.vmem [resolvable:$true] %s25
      %31 = dma.hbm_to_vmem [thread:$0]  %s1, 4352, %s26, [#allocation6], 128, 128, 8
    $region9: #{tpu_custom_call.1} parent=1 // pred_fallthru
      _
    // Predicated region
    $region10: #{tpu_custom_call.1} parent=1 // pred_check
      _
    $region11: #{tpu_custom_call.1} parent=1 // pred_check_branch
      %33 = sbr.rel (0) target = $region13
    $region12: #{tpu_custom_call.1} parent=1 // pred_region
      %34 = dma.done [#allocation3], 128
    $region13: #{tpu_custom_call.1} parent=1 // pred_fallthru
      _
    // Predicated region
    $region14: #{tpu_custom_call.1} parent=1 // pred_check
      _
    $region15: #{tpu_custom_call.1} parent=1 // pred_check_branch
      %36 = sbr.rel (0) target = $region17
    $region16: #{tpu_custom_call.1} parent=1 // pred_region
      %37 = dma.done [#allocation6], 4352
    $region17: #{tpu_custom_call.1} parent=1 // pred_fallthru
      _
    %v38 = vld [vmem:[#allocation2] sm:$0xff]
    %v39 = vld [vmem:[#allocation5] sm:$0xff]
    %v40 = vld [vmem:[#allocation5 + $0x8] sm:$0xff]
    %v41 = vld [vmem:[#allocation5 + $0x10] sm:$0xff]
    %v42 = vld [vmem:[#allocation5 + $0x18] sm:$0xff]
    %v43 = vld [vmem:[#allocation5 + $0x20] sm:$0xff]
    %v44 = vld [vmem:[#allocation5 + $0x28] sm:$0xff]
    %v45 = vld [vmem:[#allocation5 + $0x30] sm:$0xff]
    %v46 = vld [vmem:[#allocation5 + $0x38] sm:$0xff]
    %v47 = vld [vmem:[#allocation5 + $0x40] sm:$0xff]
    %v48 = vld [vmem:[#allocation5 + $0x48] sm:$0xff]
    %v49 = vld [vmem:[#allocation5 + $0x50] sm:$0xff]
    %v50 = vld [vmem:[#allocation5 + $0x58] sm:$0xff]
    %v51 = vld [vmem:[#allocation5 + $0x60] sm:$0xff]
    %v52 = vld [vmem:[#allocation5 + $0x68] sm:$0xff]
    %v53 = vld [vmem:[#allocation5 + $0x70] sm:$0xff]
    %v54 = vld [vmem:[#allocation5 + $0x78] sm:$0xff]
    %v55 = vld [vmem:[#allocation5 + $0x80] sm:$0x1]
    %v56 = vlaneseq
    %v57 = vshrl.u32 %v56, 7
    %v58 = vsub.s32 0, %v57
    %v59 = vrot.slane %v55, %v58
    %60 = vmatprep.subr.mxu0 0.0
    %61 = vmatpush1.msra.mxu0 %v54
    %62 = vmatprep.subr.mxu0 0.0
    %63 = vmatpush1.msra.mxu0 %v53
    %64 = vmatprep.subr.mxu0 0.0
    %65 = vmatpush1.msra.mxu0 %v52
    %66 = vmatprep.subr.mxu0 0.0
    %67 = vmatpush1.msra.mxu0 %v51
    %68 = vmatprep.subr.mxu0 0.0
    %69 = vmatpush1.msra.mxu0 %v50
    %70 = vmatprep.subr.mxu0 0.0
    %71 = vmatpush1.msra.mxu0 %v49
    %72 = vmatprep.subr.mxu0 0.0
    %73 = vmatpush1.msra.mxu0 %v48
    %74 = vmatprep.subr.mxu0 0.0
    %75 = vmatpush1.msra.mxu0 %v47
    %76 = vmatprep.subr.mxu0 0.0
    %77 = vmatpush1.msra.mxu0 %v46
    %78 = vmatprep.subr.mxu0 0.0
    %79 = vmatpush1.msra.mxu0 %v45
    %80 = vmatprep.subr.mxu0 0.0
    %81 = vmatpush1.msra.mxu0 %v44
    %82 = vmatprep.subr.mxu0 0.0
    %83 = vmatpush1.msra.mxu0 %v43
    %84 = vmatprep.subr.mxu0 0.0
    %85 = vmatpush1.msra.mxu0 %v42
    %86 = vmatprep.subr.mxu0 0.0
    %87 = vmatpush1.msra.mxu0 %v41
    %88 = vmatprep.subr.mxu0 0.0
    %89 = vmatpush1.msra.mxu0 %v40
    %90 = vmatprep.subr.mxu0 0.0
    %91 = vmatpush1.msra.mxu0 %v39
    %92 = vmatprep.subr.mxu0 0.0
    %93 = vmatpush2.msra.mxu0 0.0
    %94 = vmatprep.subr.mxu0 0.0
    %95 = vmatpush2.msra.mxu0 0.0
    %96 = vmatprep.subr.mxu0 0.0
    %97 = vmatpush2.msra.mxu0 0.0
    %98 = vmatprep.subr.mxu0 0.0
    %99 = vmatpush2.msra.mxu0 0.0
    %100 = vmatprep.subr.mxu0 0.0
    %101 = vmatpush2.msra.mxu0 0.0
    %102 = vmatprep.subr.mxu0 0.0
    %103 = vmatpush2.msra.mxu0 0.0
    %104 = vmatprep.subr.mxu0 0.0
    %105 = vmatpush2.msra.mxu0 0.0
    %106 = vmatprep.subr.mxu0 0.0
    %107 = vmatpush2.msra.mxu0 0.0
    %108 = vmatprep.subr.mxu0 0.0
    %109 = vmatpush2.msra.mxu0 0.0
    %110 = vmatprep.subr.mxu0 0.0
    %111 = vmatpush2.msra.mxu0 0.0
    %112 = vmatprep.subr.mxu0 0.0
    %113 = vmatpush2.msra.mxu0 0.0
    %114 = vmatprep.subr.mxu0 0.0
    %115 = vmatpush2.msra.mxu0 0.0
    %116 = vmatprep.subr.mxu0 0.0
    %117 = vmatpush2.msra.mxu0 0.0
    %118 = vmatprep.subr.mxu0 0.0
    %119 = vmatpush2.msra.mxu0 0.0
    %120 = vmatprep.subr.mxu0 0.0
    %121 = vmatpush2.msra.mxu0 0.0
    %122 = vmatprep.subr.mxu0 0.0
    %123 = vmatpush2.msra.mxu0 0.0
    %124 = vmatprep.mubr.f32.mxu0 0.0
    %125 = vmatmul.mubr.f32.gmra.mxu0 %v38
    %v126 = vpop.f32.mrf.mxu0
    %v127 = vadd.f32 %v59, %v126
    %v128 = vpop.f32.mrf.mxu0
    %129 = vdwg.mxu0
    %v130 = vmax.f32 %v127, 0.0
    %v131 = vld [vmem:[#allocation5 + $0x88] sm:$0xff]
    %v132 = vld [vmem:[#allocation5 + $0x90] sm:$0xff]
    %v133 = vld [vmem:[#allocation5 + $0x98] sm:$0xff]
    %v134 = vld [vmem:[#allocation5 + $0xa0] sm:$0xff]
    %v135 = vld [vmem:[#allocation5 + $0xa8] sm:$0xff]
    %v136 = vld [vmem:[#allocation5 + $0xb0] sm:$0xff]
    %v137 = vld [vmem:[#allocation5 + $0xb8] sm:$0xff]
    %v138 = vld [vmem:[#allocation5 + $0xc0] sm:$0xff]
    %v139 = vld [vmem:[#allocation5 + $0xc8] sm:$0xff]
    %v140 = vld [vmem:[#allocation5 + $0xd0] sm:$0xff]
    %v141 = vld [vmem:[#allocation5 + $0xd8] sm:$0xff]
    %v142 = vld [vmem:[#allocation5 + $0xe0] sm:$0xff]
    %v143 = vld [vmem:[#allocation5 + $0xe8] sm:$0xff]
    %v144 = vld [vmem:[#allocation5 + $0xf0] sm:$0xff]
    %v145 = vld [vmem:[#allocation5 + $0xf8] sm:$0xff]
    %v146 = vld [vmem:[#allocation5 + $0x100] sm:$0xff]
    %v147 = vld [vmem:[#allocation5 + $0x108] sm:$0x1]
    %v148 = vlaneseq
    %v149 = vshrl.u32 %v148, 7
    %v150 = vsub.s32 0, %v149
    %v151 = vrot.slane %v147, %v150
    %152 = vmatprep.subr.mxu0 0.0
    %153 = vmatpush1.msra.mxu0 %v146
    %154 = vmatprep.subr.mxu0 0.0
    %155 = vmatpush1.msra.mxu0 %v145
    %156 = vmatprep.subr.mxu0 0.0
    %157 = vmatpush1.msra.mxu0 %v144
    %158 = vmatprep.subr.mxu0 0.0
    %159 = vmatpush1.msra.mxu0 %v143
    %160 = vmatprep.subr.mxu0 0.0
    %161 = vmatpush1.msra.mxu0 %v142
    %162 = vmatprep.subr.mxu0 0.0
    %163 = vmatpush1.msra.mxu0 %v141
    %164 = vmatprep.subr.mxu0 0.0
    %165 = vmatpush1.msra.mxu0 %v140
    %166 = vmatprep.subr.mxu0 0.0
    %167 = vmatpush1.msra.mxu0 %v139
    %168 = vmatprep.subr.mxu0 0.0
    %169 = vmatpush1.msra.mxu0 %v138
    %170 = vmatprep.subr.mxu0 0.0
    %171 = vmatpush1.msra.mxu0 %v137
    %172 = vmatprep.subr.mxu0 0.0
    %173 = vmatpush1.msra.mxu0 %v136
    %174 = vmatprep.subr.mxu0 0.0
    %175 = vmatpush1.msra.mxu0 %v135
    %176 = vmatprep.subr.mxu0 0.0
    %177 = vmatpush1.msra.mxu0 %v134
    %178 = vmatprep.subr.mxu0 0.0
    %179 = vmatpush1.msra.mxu0 %v133
    %180 = vmatprep.subr.mxu0 0.0
    %181 = vmatpush1.msra.mxu0 %v132
    %182 = vmatprep.subr.mxu0 0.0
    %183 = vmatpush1.msra.mxu0 %v131
    %184 = vmatprep.subr.mxu0 0.0
    %185 = vmatpush2.msra.mxu0 0.0
    %186 = vmatprep.subr.mxu0 0.0
    %187 = vmatpush2.msra.mxu0 0.0
    %188 = vmatprep.subr.mxu0 0.0
    %189 = vmatpush2.msra.mxu0 0.0
    %190 = vmatprep.subr.mxu0 0.0
    %191 = vmatpush2.msra.mxu0 0.0
    %192 = vmatprep.subr.mxu0 0.0
    %193 = vmatpush2.msra.mxu0 0.0
    %194 = vmatprep.subr.mxu0 0.0
    %195 = vmatpush2.msra.mxu0 0.0
    %196 = vmatprep.subr.mxu0 0.0
    %197 = vmatpush2.msra.mxu0 0.0
    %198 = vmatprep.subr.mxu0 0.0
    %199 = vmatpush2.msra.mxu0 0.0
    %200 = vmatprep.subr.mxu0 0.0
    %201 = vmatpush2.msra.mxu0 0.0
    %202 = vmatprep.subr.mxu0 0.0
    %203 = vmatpush2.msra.mxu0 0.0
    %204 = vmatprep.subr.mxu0 0.0
    %205 = vmatpush2.msra.mxu0 0.0
    %206 = vmatprep.subr.mxu0 0.0
    %207 = vmatpush2.msra.mxu0 0.0
    %208 = vmatprep.subr.mxu0 0.0
    %209 = vmatpush2.msra.mxu0 0.0
    %210 = vmatprep.subr.mxu0 0.0
    %211 = vmatpush2.msra.mxu0 0.0
    %212 = vmatprep.subr.mxu0 0.0
    %213 = vmatpush2.msra.mxu0 0.0
    %214 = vmatprep.subr.mxu0 0.0
    %215 = vmatpush2.msra.mxu0 0.0
    %216 = vmatprep.mubr.f32.mxu0 0.0
    %217 = vmatmul.mubr.f32.gmra.mxu0 %v130
    %v218 = vpop.f32.mrf.mxu0
    %v219 = vadd.f32 %v151, %v218
    %v220 = vpop.f32.mrf.mxu0
    %221 = vdwg.mxu0
    %222 = vmax.xlane.f32.xlu0 %v219
    %v223 = vpop.xlane.xlu0 %222
    %v224 = vsub.f32 %v219, %v223
    %v225 = vmul.f32 %v224, 1.442695
    %v226 = vpow.pop %v225
    %227 = vadd.xlane.f32.xlu0 %v226
    %v228 = vpop.xlane.xlu0 %227
    %v229 = vrcp.pop %v228
    %v230 = vmul.f32 %v226, %v229
    %231 = vst [vmem:[#allocation7] sm:$0xff] %v230
    // Predicated region
    $region18: #{tpu_custom_call.1} parent=1 // pred_check
      _
    $region19: #{tpu_custom_call.1} parent=1 // pred_check_branch
      %233 = sbr.rel (0) target = $region21
    $region20: #{tpu_custom_call.1} parent=1 // pred_region
      %s235 = ssub.s32 128, 128
      %236 = vsyncadd [#allocation4], %s235
      %s238 = sshll.u32 [#allocation7], 4
      %s239 = int_to_ptr.vmem [resolvable:$true] %s238
      %241 = dma.vmem_to_hbm [thread:$0]  %s239, 128, %s2, [#allocation4]
    $region21: #{tpu_custom_call.1} parent=1 // pred_fallthru
      _
    // Predicated region
    $region22: #{tpu_custom_call.1} parent=1 // pred_check
      _
    $region23: #{tpu_custom_call.1} parent=1 // pred_check_branch
      %243 = sbr.rel (0) target = $region25
    $region24: #{tpu_custom_call.1} parent=1 // pred_region
      %244 = dma.done [#allocation4], 128
    $region25: #{tpu_custom_call.1} parent=1 // pred_fallthru
      _
    %245 = vsyncpa [#allocation3], 1
    %246 = vsyncpa [#allocation6], 1
    %247 = vsyncpa [#allocation4], 1

</llo_original>
